<compile_context>
chip_gen: v7x
topology: tpu7x:2x2x1
jax: 0.10.0
libtpu: 0.0.40
codegen_flags: <defaults>
</compile_context>

<pallas_src>
import math

import jax
import jax.numpy as jnp
from jax.experimental import pallas as pl
from jax.experimental.pallas import tpu as pltpu

LANE = 128  # TPU lane width; hidden dims are padded to this for the inner dots.


# --------------------------------------------------------------------------- #
# Kernel
# --------------------------------------------------------------------------- #
def _emg_mlp_kernel(x_ref, w1_ref, w2_ref, w3_ref, bias_ref, out_ref):
    """One batch tile of the 3-layer MLP (all f32).

    x_ref   : (TB, 72)        f32   unpadded input features
    w1_ref  : (72, 128)       f32   BN1-folded fc1 weight (cols zero-padded)
    w2_ref  : (128, 128)      f32   BN2-folded fc2 weight (zero-padded)
    w3_ref  : (128, C)        f32   fc3 weight (rows zero-padded)
    bias_ref: (3, 128)        f32   packed effective biases [b1_eff; b2_eff; b3]
    out_ref : (TB, C)         f32   logits (narrow writeback, C = num_classes)
    """
    bias = bias_ref[...]                        # (3, 128) f32
    b1 = bias[0:1, :]                           # (1, 128)
    b2 = bias[1:2, :]                           # (1, 128)
    b3 = bias[2:3, :out_ref.shape[-1]]          # (1, C)

    # fc1 (+ folded bn1) + relu
    h1 = jnp.dot(x_ref[...], w1_ref[...], preferred_element_type=jnp.float32) + b1
    h1 = jnp.maximum(h1, 0.0)
    # dropout1: identity at inference.

    # fc2 (+ folded bn2) + relu
    h2 = jnp.dot(h1, w2_ref[...], preferred_element_type=jnp.float32) + b2
    h2 = jnp.maximum(h2, 0.0)
    # dropout2: identity at inference.

    # fc3 -> logits (narrow store, only num_classes lanes)
    out = jnp.dot(h2, w3_ref[...], preferred_element_type=jnp.float32) + b3
    out_ref[...] = out.astype(out_ref.dtype)


# --------------------------------------------------------------------------- #
# Wrapper
# --------------------------------------------------------------------------- #
def _choose_batch_tile(B, batch_tile):
    """Pick a batch tile: multiple of 8 (or == B), and >=2 grid steps when it
    helps v7x's two TensorCores. Partial trailing blocks are handled by Pallas."""
    batch_tile = max(8, (batch_tile // 8) * 8)
    if B <= 16:
        return B                      # block dim equals full array dim: legal
    if B <= batch_tile:
        half = -(-B // 2)             # cdiv(B, 2): aim for >= 2 grid steps
        return min(B, ((half + 7) // 8) * 8)
    return batch_tile


def emg_lightweight_forward(x, prepared, *, batch_tile=1024):
    """Run the EMGLightweightModel forward pass as one Pallas kernel call."""
    input_size = prepared["input_size"]
    num_classes = prepared["num_classes"]

    x = x.reshape(-1, input_size).astype(jnp.float32)   # mirrors x.view(-1, D)
    B = x.shape[0]

    tb = _choose_batch_tile(B, batch_tile)
    grid = (pl.cdiv(B, tb),)

    # Only very large tiles need more than the default scoped-VMEM budget
    # (relevant on v5e where the default is 16 MiB).
    vmem_limit = (32 * 1024 * 1024) if tb >= 4096 else None

    out = pl.pallas_call(
        _emg_mlp_kernel,
        out_shape=jax.ShapeDtypeStruct((B, num_classes), jnp.float32),
        grid=grid,
        in_specs=[
            pl.BlockSpec((tb, input_size), lambda i: (i, 0)),        # x: batch-tiled
            pl.BlockSpec((input_size, LANE), lambda i: (0, 0)),      # w1: resident
            pl.BlockSpec((LANE, LANE), lambda i: (0, 0)),            # w2: resident
            pl.BlockSpec((LANE, num_classes), lambda i: (0, 0)),     # w3: resident
            pl.BlockSpec((3, LANE), lambda i: (0, 0)),               # packed biases
        ],
        out_specs=pl.BlockSpec((tb, num_classes), lambda i: (i, 0)), # narrow logits
        compiler_params=pltpu.CompilerParams(
            dimension_semantics=("parallel",),
            vmem_limit_bytes=vmem_limit),
    )(x, prepared["w1"], prepared["w2"], prepared["w3"], prepared["bias"])

    return out


# --------------------------------------------------------------------------- #
# Parameters (PyTorch-equivalent init) + folding / padding prep
# --------------------------------------------------------------------------- #
def _xavier_uniform(key, fan_in, fan_out):
    # torch.nn.init.xavier_uniform_ (gain=1): U(-a, a), a = sqrt(6/(fan_in+fan_out))
    a = math.sqrt(6.0 / (fan_in + fan_out))
    return jax.random.uniform(key, (fan_in, fan_out), jnp.float32, minval=-a, maxval=a)


def init_params(key, input_size=72, num_classes=8, hidden_dim=64):
    """Raw parameters matching the PyTorch module at construction time."""
    k1, k2, k3 = jax.random.split(key, 3)
    h2 = hidden_dim // 2

    def bn_init(dim):
        return {
            "weight": jnp.ones((dim,), jnp.float32),
            "bias": jnp.zeros((dim,), jnp.float32),
            "running_mean": jnp.zeros((dim,), jnp.float32),
            "running_var": jnp.ones((dim,), jnp.float32),
        }

    return {
        "input_size": input_size,
        "num_classes": num_classes,
        "hidden_dim": hidden_dim,
        "w1": _xavier_uniform(k1, input_size, hidden_dim),
        "b1": jnp.zeros((hidden_dim,), jnp.float32),
        "bn1": bn_init(hidden_dim),
        "w2": _xavier_uniform(k2, hidden_dim, h2),
        "b2": jnp.zeros((h2,), jnp.float32),
        "bn2": bn_init(h2),
        "w3": _xavier_uniform(k3, h2, num_classes),
        "b3": jnp.zeros((num_classes,), jnp.float32),
    }


def prepare_params(p, eps=1e-5):
    """Fold eval-mode BN into the weights, pad hidden dims to 128 lanes,
    and pack the 3 effective bias rows into one (3, 128) f32 operand."""
    input_size = p["input_size"]
    num_classes = p["num_classes"]
    hidden = p["hidden_dim"]
    h2 = hidden // 2
    assert max(hidden, h2, num_classes) <= LANE, (
        "this prep path assumes hidden/class dims fit in one 128-lane tile")

    def bn_affine(bn):
        scale = bn["weight"] / jnp.sqrt(bn["running_var"] + eps)
        shift = bn["bias"] - bn["running_mean"] * scale
        return scale, shift

    s1, t1 = bn_affine(p["bn1"])
    s2, t2 = bn_affine(p["bn2"])

    # Fold bias + BN affine into the weights / effective bias.
    w1_eff = p["w1"] * s1[None, :]            # (72, 64)
    b1_eff = p["b1"] * s1 + t1                # (64,)
    w2_eff = p["w2"] * s2[None, :]            # (64, 32)
    b2_eff = p["b2"] * s2 + t2                # (32,)
    w3_eff = p["w3"]                          # (32, num_classes)
    b3_eff = p["b3"]                          # (num_classes,)

    def pad_to(w, rows, cols):
        r, c = w.shape
        return jnp.pad(w, ((0, rows - r), (0, cols - c))).astype(jnp.float32)

    def pad_b(b):
        return jnp.pad(b, (0, LANE - b.shape[0]))

    bias_packed = jnp.stack([pad_b(b1_eff), pad_b(b2_eff), pad_b(b3_eff)],
                            axis=0).astype(jnp.float32)            # (3, 128)

    return {
        "input_size": input_size,
        "num_classes": num_classes,
        "w1": pad_to(w1_eff, input_size, LANE),     # (72, 128)  K kept unpadded
        "w2": pad_to(w2_eff, LANE, LANE),           # (128, 128)
        "w3": pad_to(w3_eff, LANE, num_classes),    # (128, C)   narrow N
        "bias": bias_packed,                        # (3, 128)
    }


# --------------------------------------------------------------------------- #
# References
# --------------------------------------------------------------------------- #
def _reference_forward_f32(x, p, eps=1e-5):
    """Full-precision PyTorch-eval-mode reference (unfolded BN)."""
    def bn(h, bn_p):
        s = bn_p["weight"] / jnp.sqrt(bn_p["running_var"] + eps)
        t = bn_p["bias"] - bn_p["running_mean"] * s
        return h * s + t

    x = x.reshape(-1, p["input_size"])
    h1 = jnp.maximum(bn(x @ p["w1"] + p["b1"], p["bn1"]), 0.0)
    h2 = jnp.maximum(bn(h1 @ p["w2"] + p["b2"], p["bn2"]), 0.0)
    return h2 @ p["w3"] + p["b3"]


def _reference_forward_folded(x, prepared):
    """jnp reference using the exact same folded/padded f32 operands."""
    xp = x.reshape(-1, prepared["input_size"]).astype(jnp.float32)
    b = prepared["bias"]
    nc = prepared["num_classes"]
    h1 = jnp.maximum(xp @ prepared["w1"] + b[0:1], 0.0)
    h2 = jnp.maximum(h1 @ prepared["w2"] + b[1:2], 0.0)
    return h2 @ prepared["w3"] + b[2:3, :nc]


# --------------------------------------------------------------------------- #
# Main
# --------------------------------------------------------------------------- #
if __name__ == "__main__":
    key = jax.random.PRNGKey(0)
    k_x, k_p = jax.random.split(key)

    B, INPUT_SIZE, NUM_CLASSES, HIDDEN = 2, 72, 8, 64
    x = jax.random.normal(k_x, (B, INPUT_SIZE), jnp.float32)

    raw_params = init_params(k_p, INPUT_SIZE, NUM_CLASSES, HIDDEN)
    prepared = prepare_params(raw_params)

    out = emg_lightweight_forward(x, prepared)
    out = jax.block_until_ready(out)
    assert out.shape == (B, NUM_CLASSES)

    # Folded / padded f32 reference (same operands as the kernel).
    ref_folded = _reference_forward_folded(x, prepared)
    assert jnp.allclose(out, ref_folded, atol=1e-3, rtol=1e-3), (
        "mismatch vs folded f32 reference")

    # Full f32 unfolded (PyTorch eval-mode) reference.
    ref_f32 = _reference_forward_f32(x, raw_params)
    assert jnp.allclose(out, ref_f32, atol=1e-3, rtol=1e-3), (
        "mismatch vs unfolded f32 reference")

    print("KERNEL_OK")
</pallas_src>

<mosaic_0001>
module attributes {stable_mosaic.version = 11 : i64} {
  func.func @_emg_mlp_kernel(%arg0: i32, %arg1: memref<2x72xf32, #tpu.memory_space<vmem>>, %arg2: memref<72x128xf32, #tpu.memory_space<vmem>>, %arg3: memref<128x128xf32, #tpu.memory_space<vmem>>, %arg4: memref<128x8xf32, #tpu.memory_space<vmem>>, %arg5: memref<3x128xf32, #tpu.memory_space<vmem>>, %arg6: memref<2x8xf32, #tpu.memory_space<vmem>>) attributes {dimension_semantics = [#tpu.dimension_semantics<parallel>], iteration_bounds = array<i64: 1>, scalar_prefetch = 0 : i64, scratch_operands = 0 : i64, tpu.core_type = #tpu.core_type<tc>, window_params = [{transform_indices = @transform_0, window_bounds = array<i64: 2, 72>}, {pipeline_mode = #tpu.pipeline_mode<synchronous>, transform_indices = @transform_1, window_bounds = array<i64: 72, 128>}, {pipeline_mode = #tpu.pipeline_mode<synchronous>, transform_indices = @transform_2, window_bounds = array<i64: 128, 128>}, {pipeline_mode = #tpu.pipeline_mode<synchronous>, transform_indices = @transform_3, window_bounds = array<i64: 128, 8>}, {pipeline_mode = #tpu.pipeline_mode<synchronous>, transform_indices = @transform_4, window_bounds = array<i64: 3, 128>}, {transform_indices = @transform_5, window_bounds = array<i64: 2, 8>}]} {
    %c0 = arith.constant 0 : index
    %c0_0 = arith.constant 0 : index
    %0 = vector.load %arg5[%c0, %c0_0] : memref<3x128xf32, #tpu.memory_space<vmem>>, vector<3x128xf32>
    %1 = vector.extract_strided_slice %0 {offsets = [0, 0], sizes = [1, 128], strides = [1, 1]} : vector<3x128xf32> to vector<1x128xf32>
    %2 = vector.extract_strided_slice %0 {offsets = [1, 0], sizes = [1, 128], strides = [1, 1]} : vector<3x128xf32> to vector<1x128xf32>
    %3 = vector.extract_strided_slice %0 {offsets = [2, 0], sizes = [1, 8], strides = [1, 1]} : vector<3x128xf32> to vector<1x8xf32>
    %c0_1 = arith.constant 0 : index
    %c0_2 = arith.constant 0 : index
    %4 = vector.load %arg1[%c0_1, %c0_2] : memref<2x72xf32, #tpu.memory_space<vmem>>, vector<2x72xf32>
    %c0_3 = arith.constant 0 : index
    %c0_4 = arith.constant 0 : index
    %5 = vector.load %arg2[%c0_3, %c0_4] : memref<72x128xf32, #tpu.memory_space<vmem>>, vector<72x128xf32>
    %cst = arith.constant dense<0.000000e+00> : vector<2x128xf32>
    %6 = tpu.matmul %4, %5, %cst {dimension_numbers = #tpu.dot_dimension_numbers<[1], [0], [0], [1], [0, 0, 1, 1], [], []>} : vector<2x72xf32>, vector<72x128xf32>, vector<2x128xf32> -> vector<2x128xf32>
    %7 = vector.broadcast %1 : vector<1x128xf32> to vector<2x128xf32>
    %8 = arith.addf %6, %7 : vector<2x128xf32>
    %cst_5 = arith.constant 0.000000e+00 : f32
    %9 = vector.broadcast %cst_5 : f32 to vector<2x128xf32>
    %10 = arith.maximumf %8, %9 : vector<2x128xf32>
    %c0_6 = arith.constant 0 : index
    %c0_7 = arith.constant 0 : index
    %11 = vector.load %arg3[%c0_6, %c0_7] : memref<128x128xf32, #tpu.memory_space<vmem>>, vector<128x128xf32>
    %cst_8 = arith.constant dense<0.000000e+00> : vector<2x128xf32>
    %12 = tpu.matmul %10, %11, %cst_8 {dimension_numbers = #tpu.dot_dimension_numbers<[1], [0], [0], [1], [0, 0, 1, 1], [], []>} : vector<2x128xf32>, vector<128x128xf32>, vector<2x128xf32> -> vector<2x128xf32>
    %13 = vector.broadcast %2 : vector<1x128xf32> to vector<2x128xf32>
    %14 = arith.addf %12, %13 : vector<2x128xf32>
    %cst_9 = arith.constant 0.000000e+00 : f32
    %15 = vector.broadcast %cst_9 : f32 to vector<2x128xf32>
    %16 = arith.maximumf %14, %15 : vector<2x128xf32>
    %c0_10 = arith.constant 0 : index
    %c0_11 = arith.constant 0 : index
    %17 = vector.load %arg4[%c0_10, %c0_11] : memref<128x8xf32, #tpu.memory_space<vmem>>, vector<128x8xf32>
    %cst_12 = arith.constant dense<0.000000e+00> : vector<2x8xf32>
    %18 = tpu.matmul %16, %17, %cst_12 {dimension_numbers = #tpu.dot_dimension_numbers<[1], [0], [0], [1], [0, 0, 1, 1], [], []>} : vector<2x128xf32>, vector<128x8xf32>, vector<2x8xf32> -> vector<2x8xf32>
    %19 = vector.broadcast %3 : vector<1x8xf32> to vector<2x8xf32>
    %20 = arith.addf %18, %19 : vector<2x8xf32>
    %c0_13 = arith.constant 0 : index
    %c0_14 = arith.constant 0 : index
    %21 = vector.load %arg6[%c0_13, %c0_14] : memref<2x8xf32, #tpu.memory_space<vmem>>, vector<2x8xf32>
    tpu.vector_store %arg6[%c0_13, %c0_14], %20 {strides = array<i32>} : memref<2x8xf32, #tpu.memory_space<vmem>>, vector<2x8xf32>,
    return
  }
  func.func @transform_0(%arg0: i32) -> (i32, i32) {
    %c0_i32 = arith.constant 0 : i32
    %c0_i32_0 = arith.constant 0 : i32
    return %arg0, %c0_i32 : i32, i32
  }
  func.func @transform_1(%arg0: i32) -> (i32, i32) {
    %c0_i32 = arith.constant 0 : i32
    %c0_i32_0 = arith.constant 0 : i32
    %c0_i32_1 = arith.constant 0 : i32
    return %c0_i32, %c0_i32_0 : i32, i32
  }
  func.func @transform_2(%arg0: i32) -> (i32, i32) {
    %c0_i32 = arith.constant 0 : i32
    %c0_i32_0 = arith.constant 0 : i32
    %c0_i32_1 = arith.constant 0 : i32
    return %c0_i32, %c0_i32_0 : i32, i32
  }
  func.func @transform_3(%arg0: i32) -> (i32, i32) {
    %c0_i32 = arith.constant 0 : i32
    %c0_i32_0 = arith.constant 0 : i32
    %c0_i32_1 = arith.constant 0 : i32
    return %c0_i32, %c0_i32_0 : i32, i32
  }
  func.func @transform_4(%arg0: i32) -> (i32, i32) {
    %c0_i32 = arith.constant 0 : i32
    %c0_i32_0 = arith.constant 0 : i32
    %c0_i32_1 = arith.constant 0 : i32
    return %c0_i32, %c0_i32_0 : i32, i32
  }
  func.func @transform_5(%arg0: i32) -> (i32, i32) {
    %c0_i32 = arith.constant 0 : i32
    %c0_i32_0 = arith.constant 0 : i32
    return %arg0, %c0_i32 : i32, i32
  }
}

</mosaic_0001>

<llo_original>
// kernel: tpu_custom_call.1
$region0: #{tpu_custom_call.1}
  #allocation0 [shape = 'u32[]', space=smem, size = 0x4, offset = 0x4, fixed_abs, tag = 'smem constant byte address 0x4 - core index']
  #allocation1 [shape = 'u32[144,128]{1,0:T(1,128)}', space=vmem, size = 0x12000, scoped, tag = 'internal scratch']
  %s0 = inlined_call_operand.vmem [shape: f32[2,72], index: 0, kind: input, shape index: {}]
  %s1 = inlined_call_operand.hbm [shape: f32[72,128], index: 1, kind: input, shape index: {}]
  %s2 = inlined_call_operand.vmem [shape: f32[128,128], index: 2, kind: input, shape index: {}]
  %s3 = inlined_call_operand.vmem [shape: f32[128,8], index: 3, kind: input, shape index: {}]
  %s4 = inlined_call_operand.vmem [shape: f32[3,128], index: 4, kind: input, shape index: {}]
  %s5 = inlined_call_operand.hbm [shape: f32[2,8], index: 5, kind: output, shape index: {}]
  %s6 = sld [smem:[#allocation0]]
  $region34: #{tpu_custom_call.1} parent=0
    _
  %s8 = ssub.s32 1, %s6
  %s9 = scalar_select 0, %s8, %s6
  $region1: #{tpu_custom_call.1} parent=0
    #allocation2 [shape = 'u8[36864]{0}', space=vmem, size = 0x9000, scoped, tag = 'input window, operand 1, single buffered']
    #allocation3 [shape = 's32[1]{0}', space=sflag, size = 0x4, scoped, tag = 'scoped memory for tpu_custom_call.1']
    #allocation4 [shape = 's32[1]{0}', space=sflag, size = 0x4, scoped, tag = 'scoped memory for tpu_custom_call.1']
    #allocation5 [shape = 'u8[1024]{0}', space=vmem, size = 0x400, scoped, tag = 'output window, operand 0, single buffered']
    %10 = vsyncpa [#allocation3], 0
    %11 = vsyncpa [#allocation4], 0
    // Predicated region
    $region2: #{tpu_custom_call.1} parent=1 // pred_check
      _
    $region3: #{tpu_custom_call.1} parent=1 // pred_check_branch
      %13 = sbr.rel (0) target = $region5
    $region4: #{tpu_custom_call.1} parent=1 // pred_region
      _
    $region5: #{tpu_custom_call.1} parent=1 // pred_fallthru
      _
    // Predicated region
    $region6: #{tpu_custom_call.1} parent=1 // pred_check
      _
    $region7: #{tpu_custom_call.1} parent=1 // pred_check_branch
      %15 = sbr.rel (0) target = $region9
    $region8: #{tpu_custom_call.1} parent=1 // pred_region
      %s17 = ssub.s32 1152, 1152
      %18 = vsyncadd [#allocation3], %s17
      %s19 = sshll.u32 [#allocation2], 4
      %s20 = int_to_ptr.vmem [resolvable:$true] %s19
      %25 = dma.hbm_to_vmem [thread:$0]  %s1, 1152, %s20, [#allocation3], 128, 128, 8
    $region9: #{tpu_custom_call.1} parent=1 // pred_fallthru
      _
    // Predicated region
    $region10: #{tpu_custom_call.1} parent=1 // pred_check
      _
    $region11: #{tpu_custom_call.1} parent=1 // pred_check_branch
      %27 = sbr.rel (0) target = $region13
    $region12: #{tpu_custom_call.1} parent=1 // pred_region
      _
    $region13: #{tpu_custom_call.1} parent=1 // pred_fallthru
      _
    // Predicated region
    $region14: #{tpu_custom_call.1} parent=1 // pred_check
      _
    $region15: #{tpu_custom_call.1} parent=1 // pred_check_branch
      %29 = sbr.rel (0) target = $region17
    $region16: #{tpu_custom_call.1} parent=1 // pred_region
      _
    $region17: #{tpu_custom_call.1} parent=1 // pred_fallthru
      _
    // Predicated region
    $region18: #{tpu_custom_call.1} parent=1 // pred_check
      _
    $region19: #{tpu_custom_call.1} parent=1 // pred_check_branch
      %31 = sbr.rel (0) target = $region21
    $region20: #{tpu_custom_call.1} parent=1 // pred_region
      _
    $region21: #{tpu_custom_call.1} parent=1 // pred_fallthru
      _
    // Predicated region
    $region22: #{tpu_custom_call.1} parent=1 // pred_check
      _
    $region23: #{tpu_custom_call.1} parent=1 // pred_check_branch
      %33 = sbr.rel (0) target = $region25
    $region24: #{tpu_custom_call.1} parent=1 // pred_region
      %34 = dma.done [#allocation3], 1152
    $region25: #{tpu_custom_call.1} parent=1 // pred_fallthru
      _
    %v35 = vld [vmem:[%s4] sm:$0x7]
    %v36 = vld [vmem:[%s0] sm:$0x3]
    %v37 = vld [vmem:[#allocation2] sm:$0xff]
    %v38 = vld [vmem:[#allocation2 + $0x8] sm:$0xff]
    %v39 = vld [vmem:[#allocation2 + $0x10] sm:$0xff]
    %v40 = vld [vmem:[#allocation2 + $0x18] sm:$0xff]
    %v41 = vld [vmem:[#allocation2 + $0x20] sm:$0xff]
    %v42 = vld [vmem:[#allocation2 + $0x28] sm:$0xff]
    %v43 = vld [vmem:[#allocation2 + $0x30] sm:$0xff]
    %v44 = vld [vmem:[#allocation2 + $0x38] sm:$0xff]
    %v45 = vld [vmem:[#allocation2 + $0x40] sm:$0xff]
    %v46 = vlaneseq
    %v47 = vshrl.u32 %v46, 7
    %v48 = vsub.s32 0, %v47
    %v49 = vrot.slane %v35, %v48
    %vm50 = vcmask 588800
    %v52 = vsel %vm50, %v36, 0
    %54 = vmatprep.subr.mxu0 0.0
    %55 = vmatpush1.msra.mxu0 %v37
    %56 = vmatprep.subr.mxu0 0.0
    %57 = vmatpush1.msra.mxu0 %v38
    %58 = vmatprep.subr.mxu0 0.0
    %59 = vmatpush1.msra.mxu0 %v39
    %60 = vmatprep.subr.mxu0 0.0
    %61 = vmatpush1.msra.mxu0 %v40
    %62 = vmatprep.subr.mxu0 0.0
    %63 = vmatpush1.msra.mxu0 %v41
    %64 = vmatprep.subr.mxu0 0.0
    %65 = vmatpush1.msra.mxu0 %v42
    %66 = vmatprep.subr.mxu0 0.0
    %67 = vmatpush1.msra.mxu0 %v43
    %68 = vmatprep.subr.mxu0 0.0
    %69 = vmatpush1.msra.mxu0 %v44
    %70 = vmatprep.subr.mxu0 0.0
    %71 = vmatpush1.msra.mxu0 %v45
    %72 = vmatprep.subr.mxu0 0.0
    %73 = vmatpush1.msra.mxu0 0.0
    %74 = vmatprep.subr.mxu0 0.0
    %75 = vmatpush1.msra.mxu0 0.0
    %76 = vmatprep.subr.mxu0 0.0
    %77 = vmatpush1.msra.mxu0 0.0
    %78 = vmatprep.subr.mxu0 0.0
    %79 = vmatpush1.msra.mxu0 0.0
    %80 = vmatprep.subr.mxu0 0.0
    %81 = vmatpush1.msra.mxu0 0.0
    %82 = vmatprep.subr.mxu0 0.0
    %83 = vmatpush1.msra.mxu0 0.0
    %84 = vmatprep.subr.mxu0 0.0
    %85 = vmatpush1.msra.mxu0 0.0
    %86 = vmatprep.subr.mxu0 0.0
    %87 = vmatpush1.msra.mxu0 0.0
    %88 = vmatprep.subr.mxu0 0.0
    %89 = vmatpush1.msra.mxu0 0.0
    %90 = vmatprep.subr.mxu0 0.0
    %91 = vmatpush1.msra.mxu0 0.0
    %92 = vmatprep.subr.mxu0 0.0
    %93 = vmatpush1.msra.mxu0 0.0
    %94 = vmatprep.subr.mxu0 0.0
    %95 = vmatpush1.msra.mxu0 0.0
    %96 = vmatprep.subr.mxu0 0.0
    %97 = vmatpush1.msra.mxu0 0.0
    %98 = vmatprep.subr.mxu0 0.0
    %99 = vmatpush1.msra.mxu0 0.0
    %100 = vmatprep.subr.mxu0 0.0
    %101 = vmatpush1.msra.mxu0 0.0
    %102 = vmatprep.subr.mxu0 0.0
    %103 = vmatpush1.msra.mxu0 0.0
    %104 = vmatprep.subr.mxu0 0.0
    %105 = vmatpush1.msra.mxu0 0.0
    %106 = vmatprep.subr.mxu0 0.0
    %107 = vmatpush1.msra.mxu0 0.0
    %108 = vmatprep.subr.mxu0 0.0
    %109 = vmatpush1.msra.mxu0 0.0
    %110 = vmatprep.subr.mxu0 0.0
    %111 = vmatpush1.msra.mxu0 0.0
    %112 = vmatprep.subr.mxu0 0.0
    %113 = vmatpush1.msra.mxu0 0.0
    %114 = vmatprep.subr.mxu0 0.0
    %115 = vmatpush1.msra.mxu0 0.0
    %116 = vmatprep.subr.mxu0 0.0
    %117 = vmatpush1.msra.mxu0 0.0
    %118 = vmatprep.mubr.f32.mxu0 0.0
    %119 = vmatmul.mubr.f32.gmra.mrb[0].mxu0 %v52
    %v120 = vpop.f32.mrb[0].mxu0
    %v121 = vadd.f32 %v49, %v120
    %v122 = vpop.f32.mrb[0].mxu0
    %123 = vdwg.mxu0
    %v124 = vmax.f32 %v121, 0.0
    %v125 = vld [vmem:[%s2] sm:$0xff]
    %v126 = vld [vmem:[%s2 + $0x8] sm:$0xff]
    %v127 = vld [vmem:[%s2 + $0x10] sm:$0xff]
    %v128 = vld [vmem:[%s2 + $0x18] sm:$0xff]
    %v129 = vld [vmem:[%s2 + $0x20] sm:$0xff]
    %v130 = vld [vmem:[%s2 + $0x28] sm:$0xff]
    %v131 = vld [vmem:[%s2 + $0x30] sm:$0xff]
    %v132 = vld [vmem:[%s2 + $0x38] sm:$0xff]
    %v133 = vld [vmem:[%s2 + $0x40] sm:$0xff]
    %v134 = vld [vmem:[%s2 + $0x48] sm:$0xff]
    %v135 = vld [vmem:[%s2 + $0x50] sm:$0xff]
    %v136 = vld [vmem:[%s2 + $0x58] sm:$0xff]
    %v137 = vld [vmem:[%s2 + $0x60] sm:$0xff]
    %v138 = vld [vmem:[%s2 + $0x68] sm:$0xff]
    %v139 = vld [vmem:[%s2 + $0x70] sm:$0xff]
    %v140 = vld [vmem:[%s2 + $0x78] sm:$0xff]
    %v141 = vlaneseq
    %v142 = vshrl.u32 %v141, 7
    %v143 = vsub.s32 1, %v142
    %v144 = vrot.slane %v35, %v143
    %145 = vmatprep.subr.mxu0 0.0
    %146 = vmatpush1.msra.mxu0 %v125
    %147 = vmatprep.subr.mxu0 0.0
    %148 = vmatpush1.msra.mxu0 %v126
    %149 = vmatprep.subr.mxu0 0.0
    %150 = vmatpush1.msra.mxu0 %v127
    %151 = vmatprep.subr.mxu0 0.0
    %152 = vmatpush1.msra.mxu0 %v128
    %153 = vmatprep.subr.mxu0 0.0
    %154 = vmatpush1.msra.mxu0 %v129
    %155 = vmatprep.subr.mxu0 0.0
    %156 = vmatpush1.msra.mxu0 %v130
    %157 = vmatprep.subr.mxu0 0.0
    %158 = vmatpush1.msra.mxu0 %v131
    %159 = vmatprep.subr.mxu0 0.0
    %160 = vmatpush1.msra.mxu0 %v132
    %161 = vmatprep.subr.mxu0 0.0
    %162 = vmatpush1.msra.mxu0 %v133
    %163 = vmatprep.subr.mxu0 0.0
    %164 = vmatpush1.msra.mxu0 %v134
    %165 = vmatprep.subr.mxu0 0.0
    %166 = vmatpush1.msra.mxu0 %v135
    %167 = vmatprep.subr.mxu0 0.0
    %168 = vmatpush1.msra.mxu0 %v136
    %169 = vmatprep.subr.mxu0 0.0
    %170 = vmatpush1.msra.mxu0 %v137
    %171 = vmatprep.subr.mxu0 0.0
    %172 = vmatpush1.msra.mxu0 %v138
    %173 = vmatprep.subr.mxu0 0.0
    %174 = vmatpush1.msra.mxu0 %v139
    %175 = vmatprep.subr.mxu0 0.0
    %176 = vmatpush1.msra.mxu0 %v140
    %177 = vmatprep.subr.mxu0 0.0
    %178 = vmatpush1.msra.mxu0 0.0
    %179 = vmatprep.subr.mxu0 0.0
    %180 = vmatpush1.msra.mxu0 0.0
    %181 = vmatprep.subr.mxu0 0.0
    %182 = vmatpush1.msra.mxu0 0.0
    %183 = vmatprep.subr.mxu0 0.0
    %184 = vmatpush1.msra.mxu0 0.0
    %185 = vmatprep.subr.mxu0 0.0
    %186 = vmatpush1.msra.mxu0 0.0
    %187 = vmatprep.subr.mxu0 0.0
    %188 = vmatpush1.msra.mxu0 0.0
    %189 = vmatprep.subr.mxu0 0.0
    %190 = vmatpush1.msra.mxu0 0.0
    %191 = vmatprep.subr.mxu0 0.0
    %192 = vmatpush1.msra.mxu0 0.0
    %193 = vmatprep.subr.mxu0 0.0
    %194 = vmatpush1.msra.mxu0 0.0
    %195 = vmatprep.subr.mxu0 0.0
    %196 = vmatpush1.msra.mxu0 0.0
    %197 = vmatprep.subr.mxu0 0.0
    %198 = vmatpush1.msra.mxu0 0.0
    %199 = vmatprep.subr.mxu0 0.0
    %200 = vmatpush1.msra.mxu0 0.0
    %201 = vmatprep.subr.mxu0 0.0
    %202 = vmatpush1.msra.mxu0 0.0
    %203 = vmatprep.subr.mxu0 0.0
    %204 = vmatpush1.msra.mxu0 0.0
    %205 = vmatprep.subr.mxu0 0.0
    %206 = vmatpush1.msra.mxu0 0.0
    %207 = vmatprep.subr.mxu0 0.0
    %208 = vmatpush1.msra.mxu0 0.0
    %209 = vmatprep.mubr.f32.mxu0 0.0
    %210 = vmatmul.mubr.f32.gmra.mrb[0].mxu0 %v124
    %v211 = vpop.f32.mrb[0].mxu0
    %v212 = vadd.f32 %v144, %v211
    %v213 = vpop.f32.mrb[0].mxu0
    %214 = vdwg.mxu0
    %v215 = vmax.f32 %v212, 0.0
    %v216 = vld [vmem:[%s3] sm:$0xff]
    %v217 = vld [vmem:[%s3 + $0x8] sm:$0xff]
    %v218 = vld [vmem:[%s3 + $0x10] sm:$0xff]
    %v219 = vld [vmem:[%s3 + $0x18] sm:$0xff]
    %v220 = vld [vmem:[%s3 + $0x20] sm:$0xff]
    %v221 = vld [vmem:[%s3 + $0x28] sm:$0xff]
    %v222 = vld [vmem:[%s3 + $0x30] sm:$0xff]
    %v223 = vld [vmem:[%s3 + $0x38] sm:$0xff]
    %v224 = vld [vmem:[%s3 + $0x40] sm:$0xff]
    %v225 = vld [vmem:[%s3 + $0x48] sm:$0xff]
    %v226 = vld [vmem:[%s3 + $0x50] sm:$0xff]
    %v227 = vld [vmem:[%s3 + $0x58] sm:$0xff]
    %v228 = vld [vmem:[%s3 + $0x60] sm:$0xff]
    %v229 = vld [vmem:[%s3 + $0x68] sm:$0xff]
    %v230 = vld [vmem:[%s3 + $0x70] sm:$0xff]
    %v231 = vld [vmem:[%s3 + $0x78] sm:$0xff]
    %v232 = vlaneseq
    %v233 = vshrl.u32 %v232, 7
    %v234 = vsub.s32 2, %v233
    %v235 = vrot.slane %v35, %v234
    %236 = vmatprep.subr.mxu0 0.0
    %237 = vmatpush1.msra.mxu0 %v216
    %238 = vmatprep.subr.mxu0 0.0
    %239 = vmatpush1.msra.mxu0 %v217
    %240 = vmatprep.subr.mxu0 0.0
    %241 = vmatpush1.msra.mxu0 %v218
    %242 = vmatprep.subr.mxu0 0.0
    %243 = vmatpush1.msra.mxu0 %v219
    %244 = vmatprep.subr.mxu0 0.0
    %245 = vmatpush1.msra.mxu0 %v220
    %246 = vmatprep.subr.mxu0 0.0
    %247 = vmatpush1.msra.mxu0 %v221
    %248 = vmatprep.subr.mxu0 0.0
    %249 = vmatpush1.msra.mxu0 %v222
    %250 = vmatprep.subr.mxu0 0.0
    %251 = vmatpush1.msra.mxu0 %v223
    %252 = vmatprep.subr.mxu0 0.0
    %253 = vmatpush1.msra.mxu0 %v224
    %254 = vmatprep.subr.mxu0 0.0
    %255 = vmatpush1.msra.mxu0 %v225
    %256 = vmatprep.subr.mxu0 0.0
    %257 = vmatpush1.msra.mxu0 %v226
    %258 = vmatprep.subr.mxu0 0.0
    %259 = vmatpush1.msra.mxu0 %v227
    %260 = vmatprep.subr.mxu0 0.0
    %261 = vmatpush1.msra.mxu0 %v228
    %262 = vmatprep.subr.mxu0 0.0
    %263 = vmatpush1.msra.mxu0 %v229
    %264 = vmatprep.subr.mxu0 0.0
    %265 = vmatpush1.msra.mxu0 %v230
    %266 = vmatprep.subr.mxu0 0.0
    %267 = vmatpush1.msra.mxu0 %v231
    %268 = vmatprep.subr.mxu0 0.0
    %269 = vmatpush1.msra.mxu0 0.0
    %270 = vmatprep.subr.mxu0 0.0
    %271 = vmatpush1.msra.mxu0 0.0
    %272 = vmatprep.subr.mxu0 0.0
    %273 = vmatpush1.msra.mxu0 0.0
    %274 = vmatprep.subr.mxu0 0.0
    %275 = vmatpush1.msra.mxu0 0.0
    %276 = vmatprep.subr.mxu0 0.0
    %277 = vmatpush1.msra.mxu0 0.0
    %278 = vmatprep.subr.mxu0 0.0
    %279 = vmatpush1.msra.mxu0 0.0
    %280 = vmatprep.subr.mxu0 0.0
    %281 = vmatpush1.msra.mxu0 0.0
    %282 = vmatprep.subr.mxu0 0.0
    %283 = vmatpush1.msra.mxu0 0.0
    %284 = vmatprep.subr.mxu0 0.0
    %285 = vmatpush1.msra.mxu0 0.0
    %286 = vmatprep.subr.mxu0 0.0
    %287 = vmatpush1.msra.mxu0 0.0
    %288 = vmatprep.subr.mxu0 0.0
    %289 = vmatpush1.msra.mxu0 0.0
    %290 = vmatprep.subr.mxu0 0.0
    %291 = vmatpush1.msra.mxu0 0.0
    %292 = vmatprep.subr.mxu0 0.0
    %293 = vmatpush1.msra.mxu0 0.0
    %294 = vmatprep.subr.mxu0 0.0
    %295 = vmatpush1.msra.mxu0 0.0
    %296 = vmatprep.subr.mxu0 0.0
    %297 = vmatpush1.msra.mxu0 0.0
    %298 = vmatprep.subr.mxu0 0.0
    %299 = vmatpush1.msra.mxu0 0.0
    %300 = vmatprep.mubr.f32.mxu0 0.0
    %301 = vmatmul.mubr.f32.gmra.mrb[0].mxu0 %v215
    %v302 = vpop.f32.mrb[0].mxu0
    %v303 = vadd.f32 %v235, %v302
    %v304 = vpop.f32.mrb[0].mxu0
    %305 = vdwg.mxu0
    %vm306 = vcmask 58368
    %307 = vst.msk [vmem:[#allocation5] sm:$0x3] %vm306, %v303
    // Predicated region
    $region26: #{tpu_custom_call.1} parent=1 // pred_check
      _
    $region27: #{tpu_custom_call.1} parent=1 // pred_check_branch
      %309 = sbr.rel (0) target = $region29
    $region28: #{tpu_custom_call.1} parent=1 // pred_region
      %s311 = ssub.s32 32, 32
      %312 = vsyncadd [#allocation4], %s311
      %s314 = sshll.u32 [#allocation5], 4
      %s315 = int_to_ptr.vmem [resolvable:$true] %s314
      %317 = dma.vmem_to_hbm [thread:$0]  %s315, 32, %s5, [#allocation4]
    $region29: #{tpu_custom_call.1} parent=1 // pred_fallthru
      _
    // Predicated region
    $region30: #{tpu_custom_call.1} parent=1 // pred_check
      _
    $region31: #{tpu_custom_call.1} parent=1 // pred_check_branch
      %319 = sbr.rel (0) target = $region33
    $region32: #{tpu_custom_call.1} parent=1 // pred_region
      %320 = dma.done [#allocation4], 32
    $region33: #{tpu_custom_call.1} parent=1 // pred_fallthru
      _
    %321 = vsyncpa [#allocation3], 1
    %322 = vsyncpa [#allocation4], 1

</llo_original>
